<compile_context>
chip_gen: v6e
topology: v6e:2x2x1
jax: 0.10.0
libtpu: 0.0.40
codegen_flags: <defaults>
</compile_context>

<pallas_src>
import functools

import jax
import jax.numpy as jnp
from jax import lax
from jax.experimental import pallas as pl
from jax.experimental.pallas import tpu as pltpu

EPS = 1e-6  # matches torch.nn.functional.pairwise_distance default eps


def _vmem_budgets():
    """(working budget for block sizing, vmem_limit_bytes).

    Conservative defaults are safe on v7x (64 MiB physical VMEM per TensorCore);
    v5e/v6e (128 MiB) get a larger budget when the chip can be identified.
    """
    working, limit = 26 * 1024 * 1024, 40 * 1024 * 1024
    try:
        info = pltpu.get_tpu_info()
        if getattr(info, "vmem_capacity_bytes", 0) >= 128 * 1024 * 1024:
            working, limit = 48 * 1024 * 1024, 64 * 1024 * 1024
    except Exception:
        pass  # unknown chip -> keep v7x-safe defaults
    return working, limit


def _choose_block_rows(batch, feat, itemsize, working_budget):
    """Bytes-based batch-tile height (multiple of 8).

    Per-row VMEM estimate includes:
      * 2 input streams x 2 pipeline buffers, feature dim lane-padded to 128
      * ~2 f32 (tb, Dpad) temporaries (diff, diff^2) materialized in VMEM
      * label input + dist output as (tb, 1) columns lane-padded to 128 lanes,
        double-buffered
    Also caps tb so there are >= 2 grid steps whenever B allows, so the
    "parallel" batch axis feeds both v7x TensorCores.
    """
    feat_pad = ((feat + 127) // 128) * 128
    per_row = (
        2 * 2 * feat_pad * itemsize   # x1, x2 streams, double-buffered
        + 2 * feat_pad * 4            # f32 diff / diff^2 intermediates
        + 2 * 128 * 4                 # label column (lane-padded), 2 buffers
        + 2 * 128 * 4                 # dist column (lane-padded), 2 buffers
    )
    tb = working_budget // max(per_row, 1)
    two_block_cap = max(8, ((pl.cdiv(batch, 2) + 7) // 8) * 8)
    tb = min(tb, two_block_cap)
    return max(8, (tb // 8) * 8)


def _contrastive_kernel(x1_ref, x2_ref, lbl_ref, dist_ref, psum_ref, *,
                        margin, batch, block_rows):
    # x1_ref/x2_ref: (tb, D) native dtype; lbl_ref: (tb, 1) f32.
    # dist_ref: (tb, 1) f32 per-row distance; psum_ref: (1, 1, 1) f32 per-block
    # partial sum of the contrastive term.
    x1 = x1_ref[...].astype(jnp.float32)
    x2 = x2_ref[...].astype(jnp.float32)
    diff = (x1 - x2) + EPS
    sq = jnp.sum(diff * diff, axis=-1, keepdims=True)     # (tb, 1) == d^2
    d = jnp.sqrt(sq)                                       # EUP slot; cheap
    dist_ref[...] = d

    lbl = lbl_ref[...]
    hinge = jnp.maximum(margin - d, 0.0)
    per_row = lbl * sq + (1.0 - lbl) * (hinge * hinge)     # (tb, 1)

    # Ragged tail: rows beyond B read unspecified data (inputs are un-padded),
    # so select them to 0 (NaN-safe) before the block reduction.
    rows = pl.program_id(0) * block_rows + lax.broadcasted_iota(
        jnp.int32, (block_rows, 1), 0)
    per_row = jnp.where(rows < batch, per_row, 0.0)
    psum_ref[...] = jnp.sum(per_row, keepdims=True).reshape(1, 1, 1)


def contrastive_loss(output1, output2, label, *, margin=2.0, block_rows=None):
    """output1/output2: (B, D); label: (B,).  Returns (dist (B,), scalar loss)."""
    B, D = output1.shape
    itemsize = jnp.dtype(output1.dtype).itemsize
    working, vmem_limit = _vmem_budgets()
    if block_rows is None:
        tb = _choose_block_rows(B, D, itemsize, working)
    else:
        tb = max(8, (int(block_rows) // 8) * 8)
    num_blocks = pl.cdiv(B, tb)

    lbl = label.reshape(B, 1).astype(jnp.float32)
    kernel = functools.partial(_contrastive_kernel, margin=float(margin),
                               batch=B, block_rows=tb)
    # TODO(synk): for very small blocks, pipeline_mode=pl.Buffered(3) on the two
    # input specs could be swept once measured on hardware.
    dist, psum = pl.pallas_call(
        kernel,
        out_shape=(
            jax.ShapeDtypeStruct((B, 1), jnp.float32),
            jax.ShapeDtypeStruct((num_blocks, 1, 1), jnp.float32),
        ),
        grid_spec=pltpu.PrefetchScalarGridSpec(
            num_scalar_prefetch=0,
            grid=(num_blocks,),
            in_specs=[
                pl.BlockSpec((tb, D), lambda i: (i, 0)),
                pl.BlockSpec((tb, D), lambda i: (i, 0)),
                pl.BlockSpec((tb, 1), lambda i: (i, 0)),
            ],
            out_specs=[
                pl.BlockSpec((tb, 1), lambda i: (i, 0)),
                pl.BlockSpec((1, 1, 1), lambda i: (i, 0, 0)),
            ],
        ),
        compiler_params=pltpu.CompilerParams(
            dimension_semantics=("parallel",),
            vmem_limit_bytes=vmem_limit,
        ),
    )(output1, output2, lbl)

    dist = dist[:, 0]
    loss = jnp.sum(psum) * (1.0 / B)   # mean over the valid (masked) rows only
    return dist, loss


def _reference(output1, output2, label, margin=2.0):
    diff = output1.astype(jnp.float32) - output2.astype(jnp.float32) + EPS
    d = jnp.sqrt(jnp.sum(diff * diff, axis=-1))
    hinge = jnp.maximum(margin - d, 0.0)
    return d, jnp.mean(label * d * d + (1.0 - label) * hinge * hinge)


if __name__ == "__main__":
    keys = jax.random.split(jax.random.PRNGKey(0), 9)

    # Case 1: small exact-fit batch, f32, single block.
    B, D = 8, 32
    o1 = jax.random.normal(keys[0], (B, D), dtype=jnp.float32)
    o2 = jax.random.normal(keys[1], (B, D), dtype=jnp.float32)
    lab = jax.random.bernoulli(keys[2], 0.5, (B,)).astype(jnp.float32)
    dist, loss = contrastive_loss(o1, o2, lab)
    jax.block_until_ready(loss)
    rd, rl = _reference(o1, o2, lab)
    assert jnp.allclose(dist, rd, atol=1e-5, rtol=1e-5)
    assert jnp.allclose(loss, rl, atol=1e-5, rtol=1e-5)

    # Case 2: forced multi-block grid + ragged tail (no wrapper-side padding).
    B2, D2 = 21, 32
    o1b = jax.random.normal(keys[3], (B2, D2), dtype=jnp.float32)
    o2b = jax.random.normal(keys[4], (B2, D2), dtype=jnp.float32)
    labb = jax.random.bernoulli(keys[5], 0.5, (B2,)).astype(jnp.float32)
    dist2, loss2 = contrastive_loss(o1b, o2b, labb, block_rows=8)
    jax.block_until_ready(loss2)
    rd2, rl2 = _reference(o1b, o2b, labb)
    assert jnp.allclose(dist2, rd2, atol=1e-5, rtol=1e-5)
    assert jnp.allclose(loss2, rl2, atol=1e-5, rtol=1e-5)

    # Case 3: bf16 inputs, non-128-multiple feature dim, default 2-block tiling
    # with a ragged tail in the last block.
    B3, D3 = 24, 160
    o1c = jax.random.normal(keys[6], (B3, D3), dtype=jnp.bfloat16)
    o2c = jax.random.normal(keys[7], (B3, D3), dtype=jnp.bfloat16)
    labc = jax.random.bernoulli(keys[8], 0.5, (B3,)).astype(jnp.float32)
    dist3, loss3 = contrastive_loss(o1c, o2c, labc)
    jax.block_until_ready(loss3)
    rd3, rl3 = _reference(o1c, o2c, labc)
    assert jnp.allclose(dist3, rd3, atol=1e-4, rtol=1e-4)
    assert jnp.allclose(loss3, rl3, atol=1e-4, rtol=1e-4)

    print("KERNEL_OK")
</pallas_src>

<mosaic_0001>
module attributes {stable_mosaic.version = 11 : i64} {
  func.func @_contrastive_kernel(%arg0: i32, %arg1: memref<8x32xf32, #tpu.memory_space<vmem>>, %arg2: memref<8x32xf32, #tpu.memory_space<vmem>>, %arg3: memref<8x1xf32, #tpu.memory_space<vmem>>, %arg4: memref<8x1xf32, #tpu.memory_space<vmem>>, %arg5: memref<1x1x1xf32, #tpu.memory_space<vmem>>) attributes {dimension_semantics = [#tpu.dimension_semantics<parallel>], iteration_bounds = array<i64: 1>, scalar_prefetch = 0 : i64, scratch_operands = 0 : i64, tpu.core_type = #tpu.core_type<tc>, window_params = [{transform_indices = @transform_0, window_bounds = array<i64: 8, 32>}, {transform_indices = @transform_1, window_bounds = array<i64: 8, 32>}, {transform_indices = @transform_2, window_bounds = array<i64: 8, 1>}, {transform_indices = @transform_3, window_bounds = array<i64: 8, 1>}, {transform_indices = @transform_4, window_bounds = array<i64: 1, 1, 1>}]} {
    %c0 = arith.constant 0 : index
    %c0_0 = arith.constant 0 : index
    %0 = vector.load %arg1[%c0, %c0_0] : memref<8x32xf32, #tpu.memory_space<vmem>>, vector<8x32xf32>
    %c0_1 = arith.constant 0 : index
    %c0_2 = arith.constant 0 : index
    %1 = vector.load %arg2[%c0_1, %c0_2] : memref<8x32xf32, #tpu.memory_space<vmem>>, vector<8x32xf32>
    %2 = arith.subf %0, %1 : vector<8x32xf32>
    %cst = arith.constant 9.99999997E-7 : f32
    %3 = vector.broadcast %cst : f32 to vector<8x32xf32>
    %4 = arith.addf %2, %3 : vector<8x32xf32>
    %5 = arith.mulf %4, %4 : vector<8x32xf32>
    %cst_3 = arith.constant dense<0.000000e+00> : vector<8xf32>
    %6 = vector.multi_reduction <add>, %5, %cst_3 [1] : vector<8x32xf32> to vector<8xf32>
    %7 = vector.shape_cast %6 : vector<8xf32> to vector<8x1xf32>
    %8 = math.sqrt %7 : vector<8x1xf32>
    %c0_4 = arith.constant 0 : index
    %c0_5 = arith.constant 0 : index
    %9 = vector.load %arg4[%c0_4, %c0_5] : memref<8x1xf32, #tpu.memory_space<vmem>>, vector<8x1xf32>
    tpu.vector_store %arg4[%c0_4, %c0_5], %8 {strides = array<i32>} : memref<8x1xf32, #tpu.memory_space<vmem>>, vector<8x1xf32>,
    %c0_6 = arith.constant 0 : index
    %c0_7 = arith.constant 0 : index
    %10 = vector.load %arg3[%c0_6, %c0_7] : memref<8x1xf32, #tpu.memory_space<vmem>>, vector<8x1xf32>
    %cst_8 = arith.constant 2.000000e+00 : f32
    %11 = vector.broadcast %cst_8 : f32 to vector<8x1xf32>
    %12 = arith.subf %11, %8 : vector<8x1xf32>
    %cst_9 = arith.constant 0.000000e+00 : f32
    %13 = vector.broadcast %cst_9 : f32 to vector<8x1xf32>
    %14 = arith.maximumf %12, %13 : vector<8x1xf32>
    %15 = arith.mulf %10, %7 : vector<8x1xf32>
    %cst_10 = arith.constant 1.000000e+00 : f32
    %16 = vector.broadcast %cst_10 : f32 to vector<8x1xf32>
    %17 = arith.subf %16, %10 : vector<8x1xf32>
    %18 = arith.mulf %14, %14 : vector<8x1xf32>
    %19 = arith.mulf %17, %18 : vector<8x1xf32>
    %20 = arith.addf %15, %19 : vector<8x1xf32>
    %c8_i32 = arith.constant 8 : i32
    %21 = arith.muli %arg0, %c8_i32 : i32
    %22 = tpu.iota {dimensions = array<i32: 0>} : vector<8x1xi32>
    %23 = vector.broadcast %21 : i32 to vector<8x1xi32>
    %24 = arith.addi %23, %22 : vector<8x1xi32>
    %c8_i32_11 = arith.constant 8 : i32
    %25 = vector.broadcast %c8_i32_11 : i32 to vector<8x1xi32>
    %26 = arith.cmpi slt, %24, %25 : vector<8x1xi32>
    %cst_12 = arith.constant 0.000000e+00 : f32
    %27 = vector.broadcast %cst_12 : f32 to vector<8x1xf32>
    %28 = arith.select %26, %20, %27 : vector<8x1xi1>, vector<8x1xf32>
    %29 = vector.shape_cast %28 : vector<8x1xf32> to vector<1x8x1xf32>
    %cst_13 = arith.constant dense<0.000000e+00> : vector<1xf32>
    %30 = vector.multi_reduction <add>, %29, %cst_13 [1, 2] : vector<1x8x1xf32> to vector<1xf32>
    %31 = vector.shape_cast %30 : vector<1xf32> to vector<1x1x1xf32>
    %32 = vector.extract %31[0, 0, 0] : f32 from vector<1x1x1xf32>
    %33 = vector.broadcast %32 : f32 to vector<1x1xf32>
    %34 = vector.shape_cast %33 : vector<1x1xf32> to vector<1x1x1xf32>
    %c0_14 = arith.constant 0 : index
    %c0_15 = arith.constant 0 : index
    %c0_16 = arith.constant 0 : index
    %35 = vector.load %arg5[%c0_14, %c0_15, %c0_16] : memref<1x1x1xf32, #tpu.memory_space<vmem>>, vector<1x1x1xf32>
    tpu.vector_store %arg5[%c0_14, %c0_15, %c0_16], %34 {strides = array<i32>} : memref<1x1x1xf32, #tpu.memory_space<vmem>>, vector<1x1x1xf32>,
    return
  }
  func.func @transform_0(%arg0: i32) -> (i32, i32) {
    %c0_i32 = arith.constant 0 : i32
    %c0_i32_0 = arith.constant 0 : i32
    return %arg0, %c0_i32 : i32, i32
  }
  func.func @transform_1(%arg0: i32) -> (i32, i32) {
    %c0_i32 = arith.constant 0 : i32
    %c0_i32_0 = arith.constant 0 : i32
    return %arg0, %c0_i32 : i32, i32
  }
  func.func @transform_2(%arg0: i32) -> (i32, i32) {
    %c0_i32 = arith.constant 0 : i32
    %c0_i32_0 = arith.constant 0 : i32
    return %arg0, %c0_i32 : i32, i32
  }
  func.func @transform_3(%arg0: i32) -> (i32, i32) {
    %c0_i32 = arith.constant 0 : i32
    %c0_i32_0 = arith.constant 0 : i32
    return %arg0, %c0_i32 : i32, i32
  }
  func.func @transform_4(%arg0: i32) -> (i32, i32, i32) {
    %c0_i32 = arith.constant 0 : i32
    %c0_i32_0 = arith.constant 0 : i32
    %c0_i32_1 = arith.constant 0 : i32
    return %arg0, %c0_i32, %c0_i32_0 : i32, i32, i32
  }
}

</mosaic_0001>

<llo_original>
// kernel: tpu_custom_call.1
$region0: #{tpu_custom_call.1}
  #allocation0 [shape = 'u32[]', space=smem, size = 0x4, offset = 0x4, fixed_abs, tag = 'smem constant byte address 0x4 - core index']
  #allocation1 [shape = 'u32[144,128]{1,0:T(1,128)}', space=vmem, size = 0x12000, scoped, tag = 'internal scratch']
  %s0 = inlined_call_operand.vmem [shape: f32[8,32], index: 0, kind: input, shape index: {}]
  %s1 = inlined_call_operand.hbm [shape: f32[8,32], index: 1, kind: input, shape index: {}]
  %s2 = inlined_call_operand.vmem [shape: f32[8,1], index: 2, kind: input, shape index: {}]
  %s3 = inlined_call_operand.vmem [shape: f32[8,1], index: 3, kind: output, shape index: {0}]
  %s4 = inlined_call_operand.hbm [shape: f32[1,1,1], index: 4, kind: output, shape index: {1}]
  %5 = xla_tuple %s3, %s4
  %s6 = sld [smem:[#allocation0]]
  $region34: #{tpu_custom_call.1} parent=0
    _
  %s8 = ssub.s32 1, %s6
  %s9 = scalar_select 0, %s8, %s6
  $region1: #{tpu_custom_call.1} parent=0
    #allocation2 [shape = 'u8[4096]{0}', space=vmem, size = 0x1000, scoped, tag = 'input window, operand 1, single buffered']
    #allocation3 [shape = 's32[1]{0}', space=sflag, size = 0x4, scoped, tag = 'scoped memory for tpu_custom_call.1']
    #allocation4 [shape = 's32[1]{0}', space=sflag, size = 0x4, scoped, tag = 'scoped memory for tpu_custom_call.1']
    #allocation5 [shape = 'u8[512]{0}', space=vmem, size = 0x400, scoped, tag = 'output window, operand 1, single buffered']
    %10 = vsyncpa [#allocation3], 0
    %11 = vsyncpa [#allocation4], 0
    // Predicated region
    $region2: #{tpu_custom_call.1} parent=1 // pred_check
      _
    $region3: #{tpu_custom_call.1} parent=1 // pred_check_branch
      %13 = sbr.rel (0) target = $region5
    $region4: #{tpu_custom_call.1} parent=1 // pred_region
      _
    $region5: #{tpu_custom_call.1} parent=1 // pred_fallthru
      _
    // Predicated region
    $region6: #{tpu_custom_call.1} parent=1 // pred_check
      _
    $region7: #{tpu_custom_call.1} parent=1 // pred_check_branch
      %15 = sbr.rel (0) target = $region9
    $region8: #{tpu_custom_call.1} parent=1 // pred_region
      %s17 = ssub.s32 128, 128
      %18 = vsyncadd [#allocation3], %s17
      %s20 = sshll.u32 [#allocation2], 4
      %s21 = int_to_ptr.vmem [resolvable:$true] %s20
      %23 = dma.hbm_to_vmem [thread:$0]  %s1, 128, %s21, [#allocation3]
    $region9: #{tpu_custom_call.1} parent=1 // pred_fallthru
      _
    // Predicated region
    $region10: #{tpu_custom_call.1} parent=1 // pred_check
      _
    $region11: #{tpu_custom_call.1} parent=1 // pred_check_branch
      %25 = sbr.rel (0) target = $region13
    $region12: #{tpu_custom_call.1} parent=1 // pred_region
      _
    $region13: #{tpu_custom_call.1} parent=1 // pred_fallthru
      _
    // Predicated region
    $region14: #{tpu_custom_call.1} parent=1 // pred_check
      _
    $region15: #{tpu_custom_call.1} parent=1 // pred_check_branch
      %27 = sbr.rel (0) target = $region17
    $region16: #{tpu_custom_call.1} parent=1 // pred_region
      %28 = dma.done [#allocation3], 128
    $region17: #{tpu_custom_call.1} parent=1 // pred_fallthru
      _
    %v29 = vld [vmem:[%s0] sm:$0xff]
    %v30 = vld [vmem:[#allocation2] sm:$0xff]
    %v31 = vsub.f32 %v29, %v30
    %v32 = vadd.f32 %v31, 1e-06
    %v33 = vmul.f32 %v32, %v32
    %vm34 = vcmask 261120
    %v35 = vsel %vm34, %v33, 0.0
    %36 = vadd.xlane.f32.xlu0 %v35
    %v37 = vpop.xlane.xlu0 %36
    %v38 = vrsqrt.pop %v37
    %v39 = vmul.f32 %v37, %v38
    %vm40 = vcmp.eq.f32.partialorder %v37, inf
    %v41 = vsel %vm40, %v37, %v39
    %vm42 = vcmp.eq.f32.partialorder %v37, 0.0
    %v43 = vand.u32 %v37, 2147483648
    %v44 = vsel %vm42, %v43, %v41
    %vm45 = vcmask 7168
    %46 = vst.msk [vmem:[%s3] sm:$0xff] %vm45, %v44
    %v47 = vld [vmem:[%s2] sm:$0xff]
    %v48 = vsub.f32 2.0, %v44
    %v49 = vmax.f32 %v48, 0.0
    %v50 = vmul.f32 %v47, %v37
    %v51 = vsub.f32 1.0, %v47
    %v52 = vmul.f32 %v49, %v49
    %v53 = vmul.f32 %v51, %v52
    %v54 = vadd.f32 %v50, %v53
    %s55 = smul.u32 0, 8
    %v56 = vlaneseq
    %v57 = vshrl.u32 %v56, 7
    %v58 = vstv %s55
    %v59 = vadd.s32 %v58, %v57
    %vm60 = vcmp.lt.s32.totalorder %v59, 8
    %v61 = vsel %vm60, %v54, 0.0
    %v62 = vsel %vm45, %v61, 0.0
    %63 = vadd.xlane.f32.xlu0 %v62
    %v64 = vpop.xlane.xlu0 %63
    %v65 = vrot.slane %v64, 4
    %v66 = vadd.f32 %v64, %v65
    %v67 = vrot.slane %v66, 2
    %v68 = vadd.f32 %v66, %v67
    %v69 = vrot.slane %v68, 1
    %v70 = vadd.f32 %v68, %v69
    %s71 = vtos %v70
    %v72 = vstv %s71
    %vm73 = vcmask 0
    %74 = vst.msk [vmem:[#allocation5] sm:$0x1] %vm73, %v72
    // Predicated region
    $region18: #{tpu_custom_call.1} parent=1 // pred_check
      _
    $region19: #{tpu_custom_call.1} parent=1 // pred_check_branch
      %76 = sbr.rel (0) target = $region21
    $region20: #{tpu_custom_call.1} parent=1 // pred_region
      _
    $region21: #{tpu_custom_call.1} parent=1 // pred_fallthru
      _
    // Predicated region
    $region22: #{tpu_custom_call.1} parent=1 // pred_check
      _
    $region23: #{tpu_custom_call.1} parent=1 // pred_check_branch
      %78 = sbr.rel (0) target = $region25
    $region24: #{tpu_custom_call.1} parent=1 // pred_region
      %s80 = ssub.s32 16, 16
      %81 = vsyncadd [#allocation4], %s80
      %s83 = sshll.u32 [#allocation5], 4
      %s84 = int_to_ptr.vmem [resolvable:$true] %s83
      %86 = dma.vmem_to_hbm [thread:$0]  %s84, 16, %s4, [#allocation4]
    $region25: #{tpu_custom_call.1} parent=1 // pred_fallthru
      _
    // Predicated region
    $region26: #{tpu_custom_call.1} parent=1 // pred_check
      _
    $region27: #{tpu_custom_call.1} parent=1 // pred_check_branch
      %88 = sbr.rel (0) target = $region29
    $region28: #{tpu_custom_call.1} parent=1 // pred_region
      _
    $region29: #{tpu_custom_call.1} parent=1 // pred_fallthru
      _
    // Predicated region
    $region30: #{tpu_custom_call.1} parent=1 // pred_check
      _
    $region31: #{tpu_custom_call.1} parent=1 // pred_check_branch
      %90 = sbr.rel (0) target = $region33
    $region32: #{tpu_custom_call.1} parent=1 // pred_region
      %91 = dma.done [#allocation4], 16
    $region33: #{tpu_custom_call.1} parent=1 // pred_fallthru
      _
    %92 = vsyncpa [#allocation3], 1
    %93 = vsyncpa [#allocation4], 1

</llo_original>
